<compile_context>
chip_gen: v5e
topology: v5e:2x2
jax: 0.10.0
libtpu: 0.0.40
codegen_flags: <defaults>
</compile_context>

<pallas_src>
import functools

import numpy as np
import jax
import jax.numpy as jnp
from jax.experimental import pallas as pl
from jax.experimental.pallas import tpu as pltpu

# ---- synthetic "cfg" ---------------------------------------------------------
TEXT_DIM = 32
IMAGE_DIM = 32
HIDDEN_DIM = 32
FUSION_DIM = HIDDEN_DIM * 4          # 128
CLASSIFIER_DIMS = [64, 32]           # only [:-1] = [64] is used for hidden layers
CLS_HID = CLASSIFIER_DIMS[0]         # 64
NUM_CLASSES = 3
LN_EPS = 1e-5                        # torch.nn.LayerNorm default
LANES = 128

# vector-slab row indices (each row is a (1,128)-padded vector)
V_B_H, V_G_H, V_BE_H = 0, 1, 2          # stage-1 bias / gamma / beta   (width 64)
V_B_FEAT = 3                            # all_feat bias                 (width 128)
V_BG, V_FG_G, V_FG_BE, V_FG2_B = 4, 5, 6, 7   # gate (widths 32,32,32,4)
V_AT1_B, V_AT_G, V_AT_BE, V_AT2_B = 8, 9, 10, 11   # attention head (128,128,128,1)
V_B_NE, V_G_NE, V_BE_NE = 12, 13, 14    # packed neutral/emotion hidden (width 128)
V_B_HEADS = 15                          # packed heads bias             (width 3)
N_VEC_ROWS = 16


def _round_up(x, m):
    return ((x + m - 1) // m) * m


# -----------------------------------------------------------------------------
# Kernel
# -----------------------------------------------------------------------------
def mm_kernel(
    x_ref,        # [TB, 64]   concat(text_pooled, image_pooled)
    w_tfimf_ref,  # [64, 64]   block-diag(text_transform.W, image_transform.W)
    m32_ref,      # [64, 64]   segmented-mean matrix (2 segments of 32)
    w_feat_ref,   # [64, 128]  builds [tf | imf | t_att | i_att]
    wg_ref,       # [64, 32]   fusion-gate layer 1 folded through w_feat
    fg2_w_ref,    # [32, 4]
    e4_ref,       # [4, 128]   block-broadcast of the 4 gate weights
    at1_w_ref,    # [128, 128]
    at2_w_ref,    # [128, 1]
    w_ne_ref,     # [128, 128] [nd1_w | ec1_w]
    m64_ref,      # [128, 128] segmented-mean matrix (2 segments of 64)
    w_heads_ref,  # [128, 3]   packed nd2 / ec2 heads
    vec_ref,      # [16, 128]  biases / LN gammas / betas (padded rows)
    out_ref,      # [TB, 128]  cols 0..2 valid
):
    def dot(a, b):
        return jnp.dot(a, b, preferred_element_type=jnp.float32)

    def vrow(r, d):
        # static slice of the resident vector slab -> [1, d], broadcasts over rows
        return vec_ref[r:r + 1, :d]

    x = x_ref[...]                                            # [TB, 64]

    # --- stage 1: text/image transforms + per-modality LayerNorm + ReLU --------
    h = dot(x, w_tfimf_ref[...]) + vrow(V_B_H, 64)            # [TB, 64]
    m32 = m32_ref[...]
    mu = dot(h, m32)                                          # segment mean (bcast)
    c = h - mu
    var = dot(c * c, m32)                                     # segment var (bcast)
    tfimf = jnp.maximum(
        c * jax.lax.rsqrt(var + LN_EPS) * vrow(V_G_H, 64) + vrow(V_BE_H, 64), 0.0)

    # --- stage 2: all_feat = [tf, imf, t_att, i_att] in ONE lane-dense matmul --
    # (seq-len-1 cross-attention reduces to the value projection of the other modality)
    all_feat = dot(tfimf, w_feat_ref[...]) + vrow(V_B_FEAT, 128)   # [TB, 128]

    # --- stage 3: fusion gate (fg1 folded through w_feat) ----------------------
    gpre = dot(tfimf, wg_ref[...]) + vrow(V_BG, 32)           # [TB, 32]
    gm = jnp.mean(gpre, axis=-1, keepdims=True)
    gc = gpre - gm
    gv = jnp.mean(gc * gc, axis=-1, keepdims=True)
    g = jnp.maximum(
        gc * jax.lax.rsqrt(gv + LN_EPS) * vrow(V_FG_G, 32) + vrow(V_FG_BE, 32), 0.0)
    gate_logits = dot(g, fg2_w_ref[...]) + vrow(V_FG2_B, 4)   # [TB, 4]
    gate_logits = gate_logits - jnp.max(gate_logits, axis=-1, keepdims=True)
    ge = jnp.exp(gate_logits)
    fw = ge / jnp.sum(ge, axis=-1, keepdims=True)             # [TB, 4]

    # block-broadcast the 4 gate weights over their 32-lane blocks via tiny matmul
    fused = all_feat * dot(fw, e4_ref[...])                   # [TB, 128]

    # --- stage 4: attention head ----------------------------------------------
    a_pre = dot(fused, at1_w_ref[...]) + vrow(V_AT1_B, 128)
    am = jnp.mean(a_pre, axis=-1, keepdims=True)
    ac = a_pre - am
    av = jnp.mean(ac * ac, axis=-1, keepdims=True)
    a = jnp.maximum(
        ac * jax.lax.rsqrt(av + LN_EPS) * vrow(V_AT_G, 128) + vrow(V_AT_BE, 128), 0.0)
    attn_w = jax.nn.sigmoid(dot(a, at2_w_ref[...]) + vrow(V_AT2_B, 1))   # [TB, 1]
    attended = fused * attn_w

    # --- stage 5: neutral detector + emotion classifier hidden layers (packed) -
    ne_pre = dot(attended, w_ne_ref[...]) + vrow(V_B_NE, 128)   # [TB, 128] = [n|e] pre
    m64 = m64_ref[...]
    nmu = dot(ne_pre, m64)
    nc = ne_pre - nmu
    nvar = dot(nc * nc, m64)
    ne = jnp.maximum(
        nc * jax.lax.rsqrt(nvar + LN_EPS) * vrow(V_G_NE, 128) + vrow(V_BE_NE, 128), 0.0)

    # --- stage 6: packed heads + final log-prob assembly -----------------------
    heads = dot(ne, w_heads_ref[...]) + vrow(V_B_HEADS, 3)    # [TB,3] = [n_logit, e0, e1]
    neutral = jax.nn.sigmoid(heads[:, 0:1])                   # [TB, 1]
    elog = heads[:, 1:3]
    emax = jnp.max(elog, axis=-1, keepdims=True)
    eexp = jnp.exp(elog - emax)
    eprob = eexp / jnp.sum(eexp, axis=-1, keepdims=True)      # [TB, 2]
    non_neutral = 1.0 - neutral

    col0 = jnp.log(eprob[:, 0:1] * non_neutral + 1e-6)
    col1 = jnp.log(neutral + 1e-6)
    col2 = jnp.log(eprob[:, 1:2] * non_neutral + 1e-6)

    # lane-dense store: place the 3 result columns in a 128-wide block
    lane = jax.lax.broadcasted_iota(jnp.int32, out_ref.shape, 1)
    out_ref[...] = jnp.where(lane == 0, col0,
                   jnp.where(lane == 1, col1,
                   jnp.where(lane == 2, col2, 0.0)))


# -----------------------------------------------------------------------------
# Wrapper
# -----------------------------------------------------------------------------
@functools.partial(jax.jit, static_argnames=("tile_b",))
def multimodal_classifier(text_pooled, image_pooled, packed, *, tile_b=512):
    mats, vec_slab = packed
    B = text_pooled.shape[0]
    x = jnp.concatenate(
        [text_pooled.astype(jnp.float32), image_pooled.astype(jnp.float32)], axis=1)

    # TILE_B: multiple of 8 (f32 sublane); 512 keeps the double-buffered working
    # set tiny even for v7x's 64 MiB VMEM.
    tb = min(int(tile_b), _round_up(B, 8))
    bp = _round_up(B, tb)
    if bp != B:
        x = jnp.pad(x, ((0, bp - B), (0, 0)))

    act_spec = pl.BlockSpec((tb, 2 * HIDDEN_DIM), lambda i: (i, 0))
    out_spec = pl.BlockSpec((tb, LANES), lambda i: (i, 0))

    def resident(a):  # parameters: same block every grid step -> DMA'd once
        return pl.BlockSpec(a.shape, lambda i: (0, 0))

    in_specs = [act_spec] + [resident(m) for m in mats] + [resident(vec_slab)]

    out_padded = pl.pallas_call(
        mm_kernel,
        out_shape=jax.ShapeDtypeStruct((bp, LANES), jnp.float32),
        grid=(pl.cdiv(bp, tb),),
        in_specs=in_specs,
        out_specs=out_spec,
        compiler_params=pltpu.CompilerParams(dimension_semantics=("parallel",)),
    )(x, *mats, vec_slab)

    return out_padded[:B, :NUM_CLASSES]


# -----------------------------------------------------------------------------
# Parameter init (torch layout: y = x @ W + b, W stored as [in, out]) + packing
# -----------------------------------------------------------------------------
def init_params(key):
    params = []

    def linear(key, din, dout, scale=0.05):
        k1, k2 = jax.random.split(key)
        w = scale * jax.random.normal(k1, (din, dout), jnp.float32)
        b = scale * jax.random.normal(k2, (dout,), jnp.float32)
        return [w, b]

    def lnorm(d):
        return [jnp.ones((d,), jnp.float32), jnp.zeros((d,), jnp.float32)]

    keys = jax.random.split(key, 16)
    params += linear(keys[0], TEXT_DIM, HIDDEN_DIM) + lnorm(HIDDEN_DIM)    # text_transform
    params += linear(keys[1], IMAGE_DIM, HIDDEN_DIM) + lnorm(HIDDEN_DIM)   # image_transform
    params += linear(keys[2], HIDDEN_DIM, HIDDEN_DIM)                      # t2i value proj
    params += linear(keys[3], HIDDEN_DIM, HIDDEN_DIM)                      # i2t value proj
    params += linear(keys[4], FUSION_DIM, HIDDEN_DIM) + lnorm(HIDDEN_DIM)  # fusion gate 1
    params += linear(keys[5], HIDDEN_DIM, 4)                               # fusion gate 2
    params += linear(keys[6], FUSION_DIM, FUSION_DIM) + lnorm(FUSION_DIM)  # attention 1
    params += linear(keys[7], FUSION_DIM, 1)                               # attention 2
    params += linear(keys[8], FUSION_DIM, CLS_HID) + lnorm(CLS_HID)        # neutral hidden
    params += linear(keys[9], CLS_HID, 1)                                  # neutral head
    params += linear(keys[10], FUSION_DIM, CLS_HID) + lnorm(CLS_HID)       # emotion hidden
    params += linear(keys[11], CLS_HID, 2)                                 # emotion head
    return params


def _pad_row(v, width=LANES):
    v = jnp.asarray(v, jnp.float32).reshape(-1)
    return jnp.pad(v, (0, width - v.shape[0]))


def pack_params(p):
    """Fold/pack the raw module parameters into the kernel's lane-dense slabs."""
    (tt_w, tt_b, tt_g, tt_be, it_w, it_b, it_g, it_be,
     t2i_vw, t2i_vb, i2t_vw, i2t_vb,
     fg1_w, fg1_b, fg_g, fg_be, fg2_w, fg2_b,
     at1_w, at1_b, at_g, at_be, at2_w, at2_b,
     nd1_w, nd1_b, nd_g, nd_be, nd2_w, nd2_b,
     ec1_w, ec1_b, ec_g, ec_be, ec2_w, ec2_b) = p

    H = HIDDEN_DIM
    Z = lambda s: jnp.zeros(s, jnp.float32)
    I = jnp.eye(H, dtype=jnp.float32)

    # block-diagonal text/image transform, applied to concat(text, img)
    w_tfimf = jnp.block([[tt_w, Z((TEXT_DIM, H))],
                         [Z((IMAGE_DIM, H)), it_w]])                 # [64, 64]
    b_h = jnp.concatenate([tt_b, it_b])
    g_h = jnp.concatenate([tt_g, it_g])
    be_h = jnp.concatenate([tt_be, it_be])

    def seg_mean_mat(total, seg):
        idx = jnp.arange(total) // seg
        return (idx[:, None] == idx[None, :]).astype(jnp.float32) / seg

    m32 = seg_mean_mat(2 * H, H)                                     # [64, 64]
    m64 = seg_mean_mat(2 * CLS_HID, CLS_HID)                         # [128, 128]

    # [tf | imf | t_att | i_att] builder (seq-len-1 cross-attn == value projection)
    w_feat = jnp.concatenate([
        jnp.concatenate([I, Z((H, H)), Z((H, H)), i2t_vw], axis=1),  # contributions of tf
        jnp.concatenate([Z((H, H)), I, t2i_vw, Z((H, H))], axis=1),  # contributions of imf
    ], axis=0)                                                       # [64, 128]
    b_feat = jnp.concatenate([Z((H,)), Z((H,)), t2i_vb, i2t_vb])     # [128]

    # fusion-gate layer 1 folded through w_feat (removes all_feat @ fg1_w)
    wg = w_feat @ fg1_w                                              # [64, 32]
    bg = b_feat @ fg1_w + fg1_b                                      # [32]

    # block-broadcast matrix: fw [B,4] -> per-32-lane-block scale [B,128]
    e4 = (jnp.arange(FUSION_DIM)[None, :] // H
          == jnp.arange(4)[:, None]).astype(jnp.float32)             # [4, 128]

    # neutral + emotion hidden layers packed along the output dim
    w_ne = jnp.concatenate([nd1_w, ec1_w], axis=1)                   # [128, 128]
    b_ne = jnp.concatenate([nd1_b, ec1_b])
    g_ne = jnp.concatenate([nd_g, ec_g])
    be_ne = jnp.concatenate([nd_be, ec_be])

    # packed heads: col 0 = neutral logit (from n), cols 1:3 = emotion logits (from e)
    w_heads = jnp.zeros((2 * CLS_HID, 3), jnp.float32)
    w_heads = w_heads.at[:CLS_HID, 0:1].set(nd2_w)
    w_heads = w_heads.at[CLS_HID:, 1:3].set(ec2_w)
    b_heads = jnp.concatenate([nd2_b, ec2_b])                        # [3]

    vec_slab = jnp.stack([
        _pad_row(b_h), _pad_row(g_h), _pad_row(be_h), _pad_row(b_feat),
        _pad_row(bg), _pad_row(fg_g), _pad_row(fg_be), _pad_row(fg2_b),
        _pad_row(at1_b), _pad_row(at_g), _pad_row(at_be), _pad_row(at2_b),
        _pad_row(b_ne), _pad_row(g_ne), _pad_row(be_ne), _pad_row(b_heads),
    ])                                                               # [16, 128]

    mats = (w_tfimf, m32, w_feat, wg, fg2_w, e4,
            at1_w, at2_w, w_ne, m64, w_heads)
    return mats, vec_slab


# -----------------------------------------------------------------------------
# Pure-JAX reference of the original module math (for correctness check)
# -----------------------------------------------------------------------------
def reference_forward(text, img, p):
    (tt_w, tt_b, tt_g, tt_be, it_w, it_b, it_g, it_be,
     t2i_vw, t2i_vb, i2t_vw, i2t_vb,
     fg1_w, fg1_b, fg_g, fg_be, fg2_w, fg2_b,
     at1_w, at1_b, at_g, at_be, at2_w, at2_b,
     nd1_w, nd1_b, nd_g, nd_be, nd2_w, nd2_b,
     ec1_w, ec1_b, ec_g, ec_be, ec2_w, ec2_b) = p

    def ln(x, g, b):
        m = jnp.mean(x, -1, keepdims=True)
        v = jnp.mean((x - m) ** 2, -1, keepdims=True)
        return (x - m) * jax.lax.rsqrt(v + LN_EPS) * g + b

    with jax.default_matmul_precision("highest"):
        tf = jax.nn.relu(ln(text @ tt_w + tt_b, tt_g, tt_be))
        imf = jax.nn.relu(ln(img @ it_w + it_b, it_g, it_be))
        t_att = imf @ t2i_vw + t2i_vb
        i_att = tf @ i2t_vw + i2t_vb
        all_feat = jnp.concatenate([tf, imf, t_att, i_att], axis=1)
        g = jax.nn.relu(ln(all_feat @ fg1_w + fg1_b, fg_g, fg_be))
        fw = jax.nn.softmax(g @ fg2_w + fg2_b, axis=1)
        fused = jnp.concatenate([tf * fw[:, 0:1], imf * fw[:, 1:2],
                                 t_att * fw[:, 2:3], i_att * fw[:, 3:4]], axis=1)
        a = jax.nn.relu(ln(fused @ at1_w + at1_b, at_g, at_be))
        attn_w = jax.nn.sigmoid(a @ at2_w + at2_b)
        attended = fused * attn_w
        n = jax.nn.relu(ln(attended @ nd1_w + nd1_b, nd_g, nd_be))
        neutral = jax.nn.sigmoid(n @ nd2_w + nd2_b)
        e = jax.nn.relu(ln(attended @ ec1_w + ec1_b, ec_g, ec_be))
        probs = jax.nn.softmax(e @ ec2_w + ec2_b, axis=1)
        nn_ = 1.0 - neutral
        return jnp.concatenate([jnp.log(probs[:, 0:1] * nn_ + 1e-6),
                                jnp.log(neutral + 1e-6),
                                jnp.log(probs[:, 1:2] * nn_ + 1e-6)], axis=1)


if __name__ == "__main__":
    key = jax.random.PRNGKey(0)
    k_text, k_img, k_params = jax.random.split(key, 3)

    B = 2
    text_pooled = jax.random.normal(k_text, (B, TEXT_DIM), jnp.float32)
    image_pooled = jax.random.normal(k_img, (B, IMAGE_DIM), jnp.float32)

    raw_params = init_params(k_params)
    packed = pack_params(raw_params)

    out = multimodal_classifier(text_pooled, image_pooled, packed)
    jax.block_until_ready(out)

    ref = reference_forward(text_pooled, image_pooled, raw_params)
    np.testing.assert_allclose(np.asarray(out), np.asarray(ref), rtol=2e-3, atol=2e-3)

    assert out.shape == (B, NUM_CLASSES)
    assert bool(jnp.all(jnp.isfinite(out)))
    print("KERNEL_OK")
</pallas_src>

<mosaic_0001>
module attributes {stable_mosaic.version = 11 : i64} {
  func.func @mm_kernel(%arg0: i32, %arg1: memref<8x64xf32, #tpu.memory_space<vmem>>, %arg2: memref<64x64xf32, #tpu.memory_space<vmem>>, %arg3: memref<64x64xf32, #tpu.memory_space<vmem>>, %arg4: memref<64x128xf32, #tpu.memory_space<vmem>>, %arg5: memref<64x32xf32, #tpu.memory_space<vmem>>, %arg6: memref<32x4xf32, #tpu.memory_space<vmem>>, %arg7: memref<4x128xf32, #tpu.memory_space<vmem>>, %arg8: memref<128x128xf32, #tpu.memory_space<vmem>>, %arg9: memref<128x1xf32, #tpu.memory_space<vmem>>, %arg10: memref<128x128xf32, #tpu.memory_space<vmem>>, %arg11: memref<128x128xf32, #tpu.memory_space<vmem>>, %arg12: memref<128x3xf32, #tpu.memory_space<vmem>>, %arg13: memref<16x128xf32, #tpu.memory_space<vmem>>, %arg14: memref<8x128xf32, #tpu.memory_space<vmem>>) attributes {dimension_semantics = [#tpu.dimension_semantics<parallel>], iteration_bounds = array<i64: 1>, scalar_prefetch = 0 : i64, scratch_operands = 0 : i64, tpu.core_type = #tpu.core_type<tc>, window_params = [{transform_indices = @transform_0, window_bounds = array<i64: 8, 64>}, {pipeline_mode = #tpu.pipeline_mode<synchronous>, transform_indices = @transform_1, window_bounds = array<i64: 64, 64>}, {pipeline_mode = #tpu.pipeline_mode<synchronous>, transform_indices = @transform_2, window_bounds = array<i64: 64, 64>}, {pipeline_mode = #tpu.pipeline_mode<synchronous>, transform_indices = @transform_3, window_bounds = array<i64: 64, 128>}, {pipeline_mode = #tpu.pipeline_mode<synchronous>, transform_indices = @transform_4, window_bounds = array<i64: 64, 32>}, {pipeline_mode = #tpu.pipeline_mode<synchronous>, transform_indices = @transform_5, window_bounds = array<i64: 32, 4>}, {pipeline_mode = #tpu.pipeline_mode<synchronous>, transform_indices = @transform_6, window_bounds = array<i64: 4, 128>}, {pipeline_mode = #tpu.pipeline_mode<synchronous>, transform_indices = @transform_7, window_bounds = array<i64: 128, 128>}, {pipeline_mode = #tpu.pipeline_mode<synchronous>, transform_indices = @transform_8, window_bounds = array<i64: 128, 1>}, {pipeline_mode = #tpu.pipeline_mode<synchronous>, transform_indices = @transform_9, window_bounds = array<i64: 128, 128>}, {pipeline_mode = #tpu.pipeline_mode<synchronous>, transform_indices = @transform_10, window_bounds = array<i64: 128, 128>}, {pipeline_mode = #tpu.pipeline_mode<synchronous>, transform_indices = @transform_11, window_bounds = array<i64: 128, 3>}, {pipeline_mode = #tpu.pipeline_mode<synchronous>, transform_indices = @transform_12, window_bounds = array<i64: 16, 128>}, {transform_indices = @transform_13, window_bounds = array<i64: 8, 128>}]} {
    %c0 = arith.constant 0 : index
    %c0_0 = arith.constant 0 : index
    %0 = vector.load %arg1[%c0, %c0_0] : memref<8x64xf32, #tpu.memory_space<vmem>>, vector<8x64xf32>
    %c0_1 = arith.constant 0 : index
    %c0_2 = arith.constant 0 : index
    %1 = vector.load %arg2[%c0_1, %c0_2] : memref<64x64xf32, #tpu.memory_space<vmem>>, vector<64x64xf32>
    %cst = arith.constant dense<0.000000e+00> : vector<8x64xf32>
    %2 = tpu.matmul %0, %1, %cst {dimension_numbers = #tpu.dot_dimension_numbers<[1], [0], [0], [1], [0, 0, 1, 1], [], []>} : vector<8x64xf32>, vector<64x64xf32>, vector<8x64xf32> -> vector<8x64xf32>
    %c0_3 = arith.constant 0 : index
    %c0_4 = arith.constant 0 : index
    %3 = vector.load %arg13[%c0_3, %c0_4] : memref<16x128xf32, #tpu.memory_space<vmem>>, vector<1x64xf32>
    %4 = vector.broadcast %3 : vector<1x64xf32> to vector<8x64xf32>
    %5 = arith.addf %2, %4 : vector<8x64xf32>
    %c0_5 = arith.constant 0 : index
    %c0_6 = arith.constant 0 : index
    %6 = vector.load %arg3[%c0_5, %c0_6] : memref<64x64xf32, #tpu.memory_space<vmem>>, vector<64x64xf32>
    %cst_7 = arith.constant dense<0.000000e+00> : vector<8x64xf32>
    %7 = tpu.matmul %5, %6, %cst_7 {dimension_numbers = #tpu.dot_dimension_numbers<[1], [0], [0], [1], [0, 0, 1, 1], [], []>} : vector<8x64xf32>, vector<64x64xf32>, vector<8x64xf32> -> vector<8x64xf32>
    %8 = arith.subf %5, %7 : vector<8x64xf32>
    %9 = arith.mulf %8, %8 : vector<8x64xf32>
    %cst_8 = arith.constant dense<0.000000e+00> : vector<8x64xf32>
    %10 = tpu.matmul %9, %6, %cst_8 {dimension_numbers = #tpu.dot_dimension_numbers<[1], [0], [0], [1], [0, 0, 1, 1], [], []>} : vector<8x64xf32>, vector<64x64xf32>, vector<8x64xf32> -> vector<8x64xf32>
    %cst_9 = arith.constant 9.99999974E-6 : f32
    %11 = vector.broadcast %cst_9 : f32 to vector<8x64xf32>
    %12 = arith.addf %10, %11 : vector<8x64xf32>
    %13 = math.rsqrt %12 : vector<8x64xf32>
    %14 = arith.mulf %8, %13 : vector<8x64xf32>
    %c1 = arith.constant 1 : index
    %c0_10 = arith.constant 0 : index
    %15 = vector.load %arg13[%c1, %c0_10] : memref<16x128xf32, #tpu.memory_space<vmem>>, vector<1x64xf32>
    %16 = vector.broadcast %15 : vector<1x64xf32> to vector<8x64xf32>
    %17 = arith.mulf %14, %16 : vector<8x64xf32>
    %c2 = arith.constant 2 : index
    %c0_11 = arith.constant 0 : index
    %18 = vector.load %arg13[%c2, %c0_11] : memref<16x128xf32, #tpu.memory_space<vmem>>, vector<1x64xf32>
    %19 = vector.broadcast %18 : vector<1x64xf32> to vector<8x64xf32>
    %20 = arith.addf %17, %19 : vector<8x64xf32>
    %cst_12 = arith.constant 0.000000e+00 : f32
    %21 = vector.broadcast %cst_12 : f32 to vector<8x64xf32>
    %22 = arith.maximumf %20, %21 : vector<8x64xf32>
    %c0_13 = arith.constant 0 : index
    %c0_14 = arith.constant 0 : index
    %23 = vector.load %arg4[%c0_13, %c0_14] : memref<64x128xf32, #tpu.memory_space<vmem>>, vector<64x128xf32>
    %cst_15 = arith.constant dense<0.000000e+00> : vector<8x128xf32>
    %24 = tpu.matmul %22, %23, %cst_15 {dimension_numbers = #tpu.dot_dimension_numbers<[1], [0], [0], [1], [0, 0, 1, 1], [], []>} : vector<8x64xf32>, vector<64x128xf32>, vector<8x128xf32> -> vector<8x128xf32>
    %c3 = arith.constant 3 : index
    %c0_16 = arith.constant 0 : index
    %25 = vector.load %arg13[%c3, %c0_16] : memref<16x128xf32, #tpu.memory_space<vmem>>, vector<1x128xf32>
    %26 = vector.broadcast %25 : vector<1x128xf32> to vector<8x128xf32>
    %27 = arith.addf %24, %26 : vector<8x128xf32>
    %c0_17 = arith.constant 0 : index
    %c0_18 = arith.constant 0 : index
    %28 = vector.load %arg5[%c0_17, %c0_18] : memref<64x32xf32, #tpu.memory_space<vmem>>, vector<64x32xf32>
    %cst_19 = arith.constant dense<0.000000e+00> : vector<8x32xf32>
    %29 = tpu.matmul %22, %28, %cst_19 {dimension_numbers = #tpu.dot_dimension_numbers<[1], [0], [0], [1], [0, 0, 1, 1], [], []>} : vector<8x64xf32>, vector<64x32xf32>, vector<8x32xf32> -> vector<8x32xf32>
    %c4 = arith.constant 4 : index
    %c0_20 = arith.constant 0 : index
    %30 = vector.load %arg13[%c4, %c0_20] : memref<16x128xf32, #tpu.memory_space<vmem>>, vector<1x32xf32>
    %31 = vector.broadcast %30 : vector<1x32xf32> to vector<8x32xf32>
    %32 = arith.addf %29, %31 : vector<8x32xf32>
    %cst_21 = arith.constant dense<0.000000e+00> : vector<8xf32>
    %33 = vector.multi_reduction <add>, %32, %cst_21 [1] : vector<8x32xf32> to vector<8xf32>
    %34 = vector.shape_cast %33 : vector<8xf32> to vector<8x1xf32>
    %cst_22 = arith.constant 3.200000e+01 : f32
    %35 = vector.broadcast %cst_22 : f32 to vector<8x1xf32>
    %36 = arith.divf %34, %35 : vector<8x1xf32>
    %37 = vector.broadcast %36 : vector<8x1xf32> to vector<8x32xf32>
    %38 = arith.subf %32, %37 : vector<8x32xf32>
    %39 = arith.mulf %38, %38 : vector<8x32xf32>
    %cst_23 = arith.constant dense<0.000000e+00> : vector<8xf32>
    %40 = vector.multi_reduction <add>, %39, %cst_23 [1] : vector<8x32xf32> to vector<8xf32>
    %41 = vector.shape_cast %40 : vector<8xf32> to vector<8x1xf32>
    %cst_24 = arith.constant 3.200000e+01 : f32
    %42 = vector.broadcast %cst_24 : f32 to vector<8x1xf32>
    %43 = arith.divf %41, %42 : vector<8x1xf32>
    %cst_25 = arith.constant 9.99999974E-6 : f32
    %44 = vector.broadcast %cst_25 : f32 to vector<8x1xf32>
    %45 = arith.addf %43, %44 : vector<8x1xf32>
    %46 = math.rsqrt %45 : vector<8x1xf32>
    %47 = vector.broadcast %46 : vector<8x1xf32> to vector<8x32xf32>
    %48 = arith.mulf %38, %47 : vector<8x32xf32>
    %c5 = arith.constant 5 : index
    %c0_26 = arith.constant 0 : index
    %49 = vector.load %arg13[%c5, %c0_26] : memref<16x128xf32, #tpu.memory_space<vmem>>, vector<1x32xf32>
    %50 = vector.broadcast %49 : vector<1x32xf32> to vector<8x32xf32>
    %51 = arith.mulf %48, %50 : vector<8x32xf32>
    %c6 = arith.constant 6 : index
    %c0_27 = arith.constant 0 : index
    %52 = vector.load %arg13[%c6, %c0_27] : memref<16x128xf32, #tpu.memory_space<vmem>>, vector<1x32xf32>
    %53 = vector.broadcast %52 : vector<1x32xf32> to vector<8x32xf32>
    %54 = arith.addf %51, %53 : vector<8x32xf32>
    %cst_28 = arith.constant 0.000000e+00 : f32
    %55 = vector.broadcast %cst_28 : f32 to vector<8x32xf32>
    %56 = arith.maximumf %54, %55 : vector<8x32xf32>
    %c0_29 = arith.constant 0 : index
    %c0_30 = arith.constant 0 : index
    %57 = vector.load %arg6[%c0_29, %c0_30] : memref<32x4xf32, #tpu.memory_space<vmem>>, vector<32x4xf32>
    %cst_31 = arith.constant dense<0.000000e+00> : vector<8x4xf32>
    %58 = tpu.matmul %56, %57, %cst_31 {dimension_numbers = #tpu.dot_dimension_numbers<[1], [0], [0], [1], [0, 0, 1, 1], [], []>} : vector<8x32xf32>, vector<32x4xf32>, vector<8x4xf32> -> vector<8x4xf32>
    %c7 = arith.constant 7 : index
    %c0_32 = arith.constant 0 : index
    %59 = vector.load %arg13[%c7, %c0_32] : memref<16x128xf32, #tpu.memory_space<vmem>>, vector<1x4xf32>
    %60 = vector.broadcast %59 : vector<1x4xf32> to vector<8x4xf32>
    %61 = arith.addf %58, %60 : vector<8x4xf32>
    %cst_33 = arith.constant dense<0xFF800000> : vector<8xf32>
    %62 = vector.multi_reduction <maximumf>, %61, %cst_33 [1] : vector<8x4xf32> to vector<8xf32>
    %63 = vector.shape_cast %62 : vector<8xf32> to vector<8x1xf32>
    %64 = vector.broadcast %63 : vector<8x1xf32> to vector<8x4xf32>
    %65 = arith.subf %61, %64 : vector<8x4xf32>
    %66 = math.exp %65 : vector<8x4xf32>
    %cst_34 = arith.constant dense<0.000000e+00> : vector<8xf32>
    %67 = vector.multi_reduction <add>, %66, %cst_34 [1] : vector<8x4xf32> to vector<8xf32>
    %68 = vector.shape_cast %67 : vector<8xf32> to vector<8x1xf32>
    %69 = vector.broadcast %68 : vector<8x1xf32> to vector<8x4xf32>
    %70 = arith.divf %66, %69 : vector<8x4xf32>
    %c0_35 = arith.constant 0 : index
    %c0_36 = arith.constant 0 : index
    %71 = vector.load %arg7[%c0_35, %c0_36] : memref<4x128xf32, #tpu.memory_space<vmem>>, vector<4x128xf32>
    %cst_37 = arith.constant dense<0.000000e+00> : vector<8x128xf32>
    %72 = tpu.matmul %70, %71, %cst_37 {dimension_numbers = #tpu.dot_dimension_numbers<[1], [0], [0], [1], [0, 0, 1, 1], [], []>} : vector<8x4xf32>, vector<4x128xf32>, vector<8x128xf32> -> vector<8x128xf32>
    %73 = arith.mulf %27, %72 : vector<8x128xf32>
    %c0_38 = arith.constant 0 : index
    %c0_39 = arith.constant 0 : index
    %74 = vector.load %arg8[%c0_38, %c0_39] : memref<128x128xf32, #tpu.memory_space<vmem>>, vector<128x128xf32>
    %cst_40 = arith.constant dense<0.000000e+00> : vector<8x128xf32>
    %75 = tpu.matmul %73, %74, %cst_40 {dimension_numbers = #tpu.dot_dimension_numbers<[1], [0], [0], [1], [0, 0, 1, 1], [], []>} : vector<8x128xf32>, vector<128x128xf32>, vector<8x128xf32> -> vector<8x128xf32>
    %c8 = arith.constant 8 : index
    %c0_41 = arith.constant 0 : index
    %76 = vector.load %arg13[%c8, %c0_41] : memref<16x128xf32, #tpu.memory_space<vmem>>, vector<1x128xf32>
    %77 = vector.broadcast %76 : vector<1x128xf32> to vector<8x128xf32>
    %78 = arith.addf %75, %77 : vector<8x128xf32>
    %cst_42 = arith.constant dense<0.000000e+00> : vector<8xf32>
    %79 = vector.multi_reduction <add>, %78, %cst_42 [1] : vector<8x128xf32> to vector<8xf32>
    %80 = vector.shape_cast %79 : vector<8xf32> to vector<8x1xf32>
    %cst_43 = arith.constant 1.280000e+02 : f32
    %81 = vector.broadcast %cst_43 : f32 to vector<8x1xf32>
    %82 = arith.divf %80, %81 : vector<8x1xf32>
    %83 = vector.broadcast %82 : vector<8x1xf32> to vector<8x128xf32>
    %84 = arith.subf %78, %83 : vector<8x128xf32>
    %85 = arith.mulf %84, %84 : vector<8x128xf32>
    %cst_44 = arith.constant dense<0.000000e+00> : vector<8xf32>
    %86 = vector.multi_reduction <add>, %85, %cst_44 [1] : vector<8x128xf32> to vector<8xf32>
    %87 = vector.shape_cast %86 : vector<8xf32> to vector<8x1xf32>
    %cst_45 = arith.constant 1.280000e+02 : f32
    %88 = vector.broadcast %cst_45 : f32 to vector<8x1xf32>
    %89 = arith.divf %87, %88 : vector<8x1xf32>
    %cst_46 = arith.constant 9.99999974E-6 : f32
    %90 = vector.broadcast %cst_46 : f32 to vector<8x1xf32>
    %91 = arith.addf %89, %90 : vector<8x1xf32>
    %92 = math.rsqrt %91 : vector<8x1xf32>
    %93 = vector.broadcast %92 : vector<8x1xf32> to vector<8x128xf32>
    %94 = arith.mulf %84, %93 : vector<8x128xf32>
    %c9 = arith.constant 9 : index
    %c0_47 = arith.constant 0 : index
    %95 = vector.load %arg13[%c9, %c0_47] : memref<16x128xf32, #tpu.memory_space<vmem>>, vector<1x128xf32>
    %96 = vector.broadcast %95 : vector<1x128xf32> to vector<8x128xf32>
    %97 = arith.mulf %94, %96 : vector<8x128xf32>
    %c10 = arith.constant 10 : index
    %c0_48 = arith.constant 0 : index
    %98 = vector.load %arg13[%c10, %c0_48] : memref<16x128xf32, #tpu.memory_space<vmem>>, vector<1x128xf32>
    %99 = vector.broadcast %98 : vector<1x128xf32> to vector<8x128xf32>
    %100 = arith.addf %97, %99 : vector<8x128xf32>
    %cst_49 = arith.constant 0.000000e+00 : f32
    %101 = vector.broadcast %cst_49 : f32 to vector<8x128xf32>
    %102 = arith.maximumf %100, %101 : vector<8x128xf32>
    %c0_50 = arith.constant 0 : index
    %c0_51 = arith.constant 0 : index
    %103 = vector.load %arg9[%c0_50, %c0_51] : memref<128x1xf32, #tpu.memory_space<vmem>>, vector<128x1xf32>
    %cst_52 = arith.constant dense<0.000000e+00> : vector<8x1xf32>
    %104 = tpu.matmul %102, %103, %cst_52 {dimension_numbers = #tpu.dot_dimension_numbers<[1], [0], [0], [1], [0, 0, 1, 1], [], []>} : vector<8x128xf32>, vector<128x1xf32>, vector<8x1xf32> -> vector<8x1xf32>
    %c11 = arith.constant 11 : index
    %c0_53 = arith.constant 0 : index
    %105 = vector.load %arg13[%c11, %c0_53] : memref<16x128xf32, #tpu.memory_space<vmem>>, vector<1x1xf32>
    %106 = vector.broadcast %105 : vector<1x1xf32> to vector<8x1xf32>
    %107 = arith.addf %104, %106 : vector<8x1xf32>
    %108 = arith.negf %107 : vector<8x1xf32>
    %109 = math.exp %108 : vector<8x1xf32>
    %cst_54 = arith.constant 1.000000e+00 : f32
    %110 = vector.broadcast %cst_54 : f32 to vector<8x1xf32>
    %111 = arith.addf %110, %109 : vector<8x1xf32>
    %112 = arith.divf %110, %111 : vector<8x1xf32>
    %113 = vector.broadcast %112 : vector<8x1xf32> to vector<8x128xf32>
    %114 = arith.mulf %73, %113 : vector<8x128xf32>
    %c0_55 = arith.constant 0 : index
    %c0_56 = arith.constant 0 : index
    %115 = vector.load %arg10[%c0_55, %c0_56] : memref<128x128xf32, #tpu.memory_space<vmem>>, vector<128x128xf32>
    %cst_57 = arith.constant dense<0.000000e+00> : vector<8x128xf32>
    %116 = tpu.matmul %114, %115, %cst_57 {dimension_numbers = #tpu.dot_dimension_numbers<[1], [0], [0], [1], [0, 0, 1, 1], [], []>} : vector<8x128xf32>, vector<128x128xf32>, vector<8x128xf32> -> vector<8x128xf32>
    %c12 = arith.constant 12 : index
    %c0_58 = arith.constant 0 : index
    %117 = vector.load %arg13[%c12, %c0_58] : memref<16x128xf32, #tpu.memory_space<vmem>>, vector<1x128xf32>
    %118 = vector.broadcast %117 : vector<1x128xf32> to vector<8x128xf32>
    %119 = arith.addf %116, %118 : vector<8x128xf32>
    %c0_59 = arith.constant 0 : index
    %c0_60 = arith.constant 0 : index
    %120 = vector.load %arg11[%c0_59, %c0_60] : memref<128x128xf32, #tpu.memory_space<vmem>>, vector<128x128xf32>
    %cst_61 = arith.constant dense<0.000000e+00> : vector<8x128xf32>
    %121 = tpu.matmul %119, %120, %cst_61 {dimension_numbers = #tpu.dot_dimension_numbers<[1], [0], [0], [1], [0, 0, 1, 1], [], []>} : vector<8x128xf32>, vector<128x128xf32>, vector<8x128xf32> -> vector<8x128xf32>
    %122 = arith.subf %119, %121 : vector<8x128xf32>
    %123 = arith.mulf %122, %122 : vector<8x128xf32>
    %cst_62 = arith.constant dense<0.000000e+00> : vector<8x128xf32>
    %124 = tpu.matmul %123, %120, %cst_62 {dimension_numbers = #tpu.dot_dimension_numbers<[1], [0], [0], [1], [0, 0, 1, 1], [], []>} : vector<8x128xf32>, vector<128x128xf32>, vector<8x128xf32> -> vector<8x128xf32>
    %cst_63 = arith.constant 9.99999974E-6 : f32
    %125 = vector.broadcast %cst_63 : f32 to vector<8x128xf32>
    %126 = arith.addf %124, %125 : vector<8x128xf32>
    %127 = math.rsqrt %126 : vector<8x128xf32>
    %128 = arith.mulf %122, %127 : vector<8x128xf32>
    %c13 = arith.constant 13 : index
    %c0_64 = arith.constant 0 : index
    %129 = vector.load %arg13[%c13, %c0_64] : memref<16x128xf32, #tpu.memory_space<vmem>>, vector<1x128xf32>
    %130 = vector.broadcast %129 : vector<1x128xf32> to vector<8x128xf32>
    %131 = arith.mulf %128, %130 : vector<8x128xf32>
    %c14 = arith.constant 14 : index
    %c0_65 = arith.constant 0 : index
    %132 = vector.load %arg13[%c14, %c0_65] : memref<16x128xf32, #tpu.memory_space<vmem>>, vector<1x128xf32>
    %133 = vector.broadcast %132 : vector<1x128xf32> to vector<8x128xf32>
    %134 = arith.addf %131, %133 : vector<8x128xf32>
    %cst_66 = arith.constant 0.000000e+00 : f32
    %135 = vector.broadcast %cst_66 : f32 to vector<8x128xf32>
    %136 = arith.maximumf %134, %135 : vector<8x128xf32>
    %c0_67 = arith.constant 0 : index
    %c0_68 = arith.constant 0 : index
    %137 = vector.load %arg12[%c0_67, %c0_68] : memref<128x3xf32, #tpu.memory_space<vmem>>, vector<128x3xf32>
    %cst_69 = arith.constant dense<0.000000e+00> : vector<8x3xf32>
    %138 = tpu.matmul %136, %137, %cst_69 {dimension_numbers = #tpu.dot_dimension_numbers<[1], [0], [0], [1], [0, 0, 1, 1], [], []>} : vector<8x128xf32>, vector<128x3xf32>, vector<8x3xf32> -> vector<8x3xf32>
    %c15 = arith.constant 15 : index
    %c0_70 = arith.constant 0 : index
    %139 = vector.load %arg13[%c15, %c0_70] : memref<16x128xf32, #tpu.memory_space<vmem>>, vector<1x3xf32>
    %140 = vector.broadcast %139 : vector<1x3xf32> to vector<8x3xf32>
    %141 = arith.addf %138, %140 : vector<8x3xf32>
    %142 = vector.extract_strided_slice %141 {offsets = [0, 0], sizes = [8, 1], strides = [1, 1]} : vector<8x3xf32> to vector<8x1xf32>
    %143 = arith.negf %142 : vector<8x1xf32>
    %144 = math.exp %143 : vector<8x1xf32>
    %cst_71 = arith.constant 1.000000e+00 : f32
    %145 = vector.broadcast %cst_71 : f32 to vector<8x1xf32>
    %146 = arith.addf %145, %144 : vector<8x1xf32>
    %147 = arith.divf %145, %146 : vector<8x1xf32>
    %148 = vector.extract_strided_slice %141 {offsets = [0, 1], sizes = [8, 2], strides = [1, 1]} : vector<8x3xf32> to vector<8x2xf32>
    %cst_72 = arith.constant dense<0xFF800000> : vector<8xf32>
    %149 = vector.multi_reduction <maximumf>, %148, %cst_72 [1] : vector<8x2xf32> to vector<8xf32>
    %150 = vector.shape_cast %149 : vector<8xf32> to vector<8x1xf32>
    %151 = vector.broadcast %150 : vector<8x1xf32> to vector<8x2xf32>
    %152 = arith.subf %148, %151 : vector<8x2xf32>
    %153 = math.exp %152 : vector<8x2xf32>
    %cst_73 = arith.constant dense<0.000000e+00> : vector<8xf32>
    %154 = vector.multi_reduction <add>, %153, %cst_73 [1] : vector<8x2xf32> to vector<8xf32>
    %155 = vector.shape_cast %154 : vector<8xf32> to vector<8x1xf32>
    %156 = vector.broadcast %155 : vector<8x1xf32> to vector<8x2xf32>
    %157 = arith.divf %153, %156 : vector<8x2xf32>
    %cst_74 = arith.constant 1.000000e+00 : f32
    %158 = vector.broadcast %cst_74 : f32 to vector<8x1xf32>
    %159 = arith.subf %158, %147 : vector<8x1xf32>
    %160 = vector.extract_strided_slice %157 {offsets = [0, 0], sizes = [8, 1], strides = [1, 1]} : vector<8x2xf32> to vector<8x1xf32>
    %161 = arith.mulf %160, %159 : vector<8x1xf32>
    %cst_75 = arith.constant 9.99999997E-7 : f32
    %162 = vector.broadcast %cst_75 : f32 to vector<8x1xf32>
    %163 = arith.addf %161, %162 : vector<8x1xf32>
    %164 = math.log %163 : vector<8x1xf32>
    %cst_76 = arith.constant 9.99999997E-7 : f32
    %165 = vector.broadcast %cst_76 : f32 to vector<8x1xf32>
    %166 = arith.addf %147, %165 : vector<8x1xf32>
    %167 = math.log %166 : vector<8x1xf32>
    %168 = vector.extract_strided_slice %157 {offsets = [0, 1], sizes = [8, 1], strides = [1, 1]} : vector<8x2xf32> to vector<8x1xf32>
    %169 = arith.mulf %168, %159 : vector<8x1xf32>
    %cst_77 = arith.constant 9.99999997E-7 : f32
    %170 = vector.broadcast %cst_77 : f32 to vector<8x1xf32>
    %171 = arith.addf %169, %170 : vector<8x1xf32>
    %172 = math.log %171 : vector<8x1xf32>
    %173 = tpu.iota {dimensions = array<i32: 1>} : vector<8x128xi32>
    %c0_i32 = arith.constant 0 : i32
    %174 = vector.broadcast %c0_i32 : i32 to vector<8x128xi32>
    %175 = arith.cmpi eq, %173, %174 : vector<8x128xi32>
    %c1_i32 = arith.constant 1 : i32
    %176 = vector.broadcast %c1_i32 : i32 to vector<8x128xi32>
    %177 = arith.cmpi eq, %173, %176 : vector<8x128xi32>
    %c2_i32 = arith.constant 2 : i32
    %178 = vector.broadcast %c2_i32 : i32 to vector<8x128xi32>
    %179 = arith.cmpi eq, %173, %178 : vector<8x128xi32>
    %cst_78 = arith.constant 0.000000e+00 : f32
    %180 = vector.shape_cast %172 : vector<8x1xf32> to vector<8x1xf32>
    %181 = vector.broadcast %180 : vector<8x1xf32> to vector<8x128xf32>
    %182 = vector.broadcast %cst_78 : f32 to vector<8x128xf32>
    %183 = arith.select %179, %181, %182 : vector<8x128xi1>, vector<8x128xf32>
    %184 = vector.shape_cast %167 : vector<8x1xf32> to vector<8x1xf32>
    %185 = vector.broadcast %184 : vector<8x1xf32> to vector<8x128xf32>
    %186 = arith.select %177, %185, %183 : vector<8x128xi1>, vector<8x128xf32>
    %187 = vector.shape_cast %164 : vector<8x1xf32> to vector<8x1xf32>
    %188 = vector.broadcast %187 : vector<8x1xf32> to vector<8x128xf32>
    %189 = arith.select %175, %188, %186 : vector<8x128xi1>, vector<8x128xf32>
    %c0_79 = arith.constant 0 : index
    %c0_80 = arith.constant 0 : index
    %190 = vector.load %arg14[%c0_79, %c0_80] : memref<8x128xf32, #tpu.memory_space<vmem>>, vector<8x128xf32>
    tpu.vector_store %arg14[%c0_79, %c0_80], %189 {strides = array<i32>} : memref<8x128xf32, #tpu.memory_space<vmem>>, vector<8x128xf32>,
    return
  }
  func.func @transform_0(%arg0: i32) -> (i32, i32) {
    %c0_i32 = arith.constant 0 : i32
    %c0_i32_0 = arith.constant 0 : i32
    return %arg0, %c0_i32 : i32, i32
  }
  func.func @transform_1(%arg0: i32) -> (i32, i32) {
    %c0_i32 = arith.constant 0 : i32
    %c0_i32_0 = arith.constant 0 : i32
    %c0_i32_1 = arith.constant 0 : i32
    return %c0_i32, %c0_i32_0 : i32, i32
  }
  func.func @transform_2(%arg0: i32) -> (i32, i32) {
    %c0_i32 = arith.constant 0 : i32
    %c0_i32_0 = arith.constant 0 : i32
    %c0_i32_1 = arith.constant 0 : i32
    return %c0_i32, %c0_i32_0 : i32, i32
  }
  func.func @transform_3(%arg0: i32) -> (i32, i32) {
    %c0_i32 = arith.constant 0 : i32
    %c0_i32_0 = arith.constant 0 : i32
    %c0_i32_1 = arith.constant 0 : i32
    return %c0_i32, %c0_i32_0 : i32, i32
  }
  func.func @transform_4(%arg0: i32) -> (i32, i32) {
    %c0_i32 = arith.constant 0 : i32
    %c0_i32_0 = arith.constant 0 : i32
    %c0_i32_1 = arith.constant 0 : i32
    return %c0_i32, %c0_i32_0 : i32, i32
  }
  func.func @transform_5(%arg0: i32) -> (i32, i32) {
    %c0_i32 = arith.constant 0 : i32
    %c0_i32_0 = arith.constant 0 : i32
    %c0_i32_1 = arith.constant 0 : i32
    return %c0_i32, %c0_i32_0 : i32, i32
  }
  func.func @transform_6(%arg0: i32) -> (i32, i32) {
    %c0_i32 = arith.constant 0 : i32
    %c0_i32_0 = arith.constant 0 : i32
    %c0_i32_1 = arith.constant 0 : i32
    return %c0_i32, %c0_i32_0 : i32, i32
  }
  func.func @transform_7(%arg0: i32) -> (i32, i32) {
    %c0_i32 = arith.constant 0 : i32
    %c0_i32_0 = arith.constant 0 : i32
    %c0_i32_1 = arith.constant 0 : i32
    return %c0_i32, %c0_i32_0 : i32, i32
  }
  func.func @transform_8(%arg0: i32) -> (i32, i32) {
    %c0_i32 = arith.constant 0 : i32
    %c0_i32_0 = arith.constant 0 : i32
    %c0_i32_1 = arith.constant 0 : i32
    return %c0_i32, %c0_i32_0 : i32, i32
  }
  func.func @transform_9(%arg0: i32) -> (i32, i32) {
    %c0_i32 = arith.constant 0 : i32
    %c0_i32_0 = arith.constant 0 : i32
    %c0_i32_1 = arith.constant 0 : i32
    return %c0_i32, %c0_i32_0 : i32, i32
  }
  func.func @transform_10(%arg0: i32) -> (i32, i32) {
    %c0_i32 = arith.constant 0 : i32
    %c0_i32_0 = arith.constant 0 : i32
    %c0_i32_1 = arith.constant 0 : i32
    return %c0_i32, %c0_i32_0 : i32, i32
  }
  func.func @transform_11(%arg0: i32) -> (i32, i32) {
    %c0_i32 = arith.constant 0 : i32
    %c0_i32_0 = arith.constant 0 : i32
    %c0_i32_1 = arith.constant 0 : i32
    return %c0_i32, %c0_i32_0 : i32, i32
  }
  func.func @transform_12(%arg0: i32) -> (i32, i32) {
    %c0_i32 = arith.constant 0 : i32
    %c0_i32_0 = arith.constant 0 : i32
    %c0_i32_1 = arith.constant 0 : i32
    return %c0_i32, %c0_i32_0 : i32, i32
  }
  func.func @transform_13(%arg0: i32) -> (i32, i32) {
    %c0_i32 = arith.constant 0 : i32
    %c0_i32_0 = arith.constant 0 : i32
    return %arg0, %c0_i32 : i32, i32
  }
}

</mosaic_0001>

<llo_original>
// kernel: multimodal_classifier.1
$region0: #{multimodal_classifier.1}
  #allocation0 [shape = 'u32[]', space=smem, size = 0x4, offset = 0x4, fixed_abs, tag = 'smem constant byte address 0x4 - core index']
  #allocation1 [shape = 'u32[72,128]{1,0:T(1,128)}', space=vmem, size = 0x9000, scoped, tag = 'internal scratch']
  %s0 = inlined_call_operand.vmem [shape: f32[8,64], index: 0, kind: input, shape index: {}]
  %s1 = inlined_call_operand.vmem [shape: f32[64,64], index: 1, kind: input, shape index: {}]
  %s2 = inlined_call_operand.hbm [shape: f32[64,64], index: 2, kind: input, shape index: {}]
  %s3 = inlined_call_operand.hbm [shape: f32[64,128], index: 3, kind: input, shape index: {}]
  %s4 = inlined_call_operand.vmem [shape: f32[64,32], index: 4, kind: input, shape index: {}]
  %s5 = inlined_call_operand.vmem [shape: f32[32,4], index: 5, kind: input, shape index: {}]
  %s6 = inlined_call_operand.vmem [shape: f32[4,128], index: 6, kind: input, shape index: {}]
  %s7 = inlined_call_operand.vmem [shape: f32[128,128], index: 7, kind: input, shape index: {}]
  %s8 = inlined_call_operand.vmem [shape: f32[128,1], index: 8, kind: input, shape index: {}]
  %s9 = inlined_call_operand.vmem [shape: f32[128,128], index: 9, kind: input, shape index: {}]
  %s10 = inlined_call_operand.hbm [shape: f32[128,128], index: 10, kind: input, shape index: {}]
  %s11 = inlined_call_operand.vmem [shape: f32[128,3], index: 11, kind: input, shape index: {}]
  %s12 = inlined_call_operand.vmem [shape: f32[16,128], index: 12, kind: input, shape index: {}]
  %s13 = inlined_call_operand.vmem [shape: f32[8,128], index: 13, kind: output, shape index: {}]
  %s14 = sld [smem:[#allocation0]]
  $region74: #{multimodal_classifier.1} parent=0
    _
  %s16 = ssub.s32 1, %s14
  %s17 = scalar_select 0, %s16, %s14
  $region1: #{multimodal_classifier.1} parent=0
    #allocation2 [shape = 'u8[32768]{0}', space=vmem, size = 0x8000, scoped, tag = 'input window, operand 2, single buffered']
    #allocation3 [shape = 's32[1]{0}', space=sflag, size = 0x4, scoped, tag = 'scoped memory for multimodal_classifier.1']
    #allocation4 [shape = 'u8[32768]{0}', space=vmem, size = 0x8000, scoped, tag = 'input window, operand 3, single buffered']
    #allocation5 [shape = 's32[1]{0}', space=sflag, size = 0x4, scoped, tag = 'scoped memory for multimodal_classifier.1']
    #allocation6 [shape = 'u8[65536]{0}', space=vmem, size = 0x10000, scoped, tag = 'input window, operand 10, single buffered']
    %18 = vsyncpa [#allocation3], 0
    %19 = vsyncpa [#allocation5], 0
    // Predicated region
    $region2: #{multimodal_classifier.1} parent=1 // pred_check
      _
    $region3: #{multimodal_classifier.1} parent=1 // pred_check_branch
      %21 = sbr.rel (0) target = $region5
    $region4: #{multimodal_classifier.1} parent=1 // pred_region
      _
    $region5: #{multimodal_classifier.1} parent=1 // pred_fallthru
      _
    // Predicated region
    $region6: #{multimodal_classifier.1} parent=1 // pred_check
      _
    $region7: #{multimodal_classifier.1} parent=1 // pred_check_branch
      %23 = sbr.rel (0) target = $region9
    $region8: #{multimodal_classifier.1} parent=1 // pred_region
      _
    $region9: #{multimodal_classifier.1} parent=1 // pred_fallthru
      _
    // Predicated region
    $region10: #{multimodal_classifier.1} parent=1 // pred_check
      _
    $region11: #{multimodal_classifier.1} parent=1 // pred_check_branch
      %25 = sbr.rel (0) target = $region13
    $region12: #{multimodal_classifier.1} parent=1 // pred_region
      %27 = vsyncadd [#allocation3], 0
      %s28 = sshll.u32 %s2, 4
      %s29 = int_to_ptr.hbm [resolvable:$true] %s28
      %s30 = sshll.u32 [#allocation2], 4
      %s31 = int_to_ptr.vmem [resolvable:$true] %s30
      %36 = dma.hbm_to_vmem [thread:$0]  %s29, 1024, %s31, [#allocation3], 128, 128, 8
    $region13: #{multimodal_classifier.1} parent=1 // pred_fallthru
      _
    // Predicated region
    $region14: #{multimodal_classifier.1} parent=1 // pred_check
      _
    $region15: #{multimodal_classifier.1} parent=1 // pred_check_branch
      %38 = sbr.rel (0) target = $region17
    $region16: #{multimodal_classifier.1} parent=1 // pred_region
      %40 = vsyncadd [#allocation5], 0
      %s41 = sshll.u32 %s3, 4
      %s42 = int_to_ptr.hbm [resolvable:$true] %s41
      %s43 = sshll.u32 [#allocation4], 4
      %s44 = int_to_ptr.vmem [resolvable:$true] %s43
      %49 = dma.hbm_to_vmem [thread:$0]  %s42, 1024, %s44, [#allocation5], 128, 128, 8
    $region17: #{multimodal_classifier.1} parent=1 // pred_fallthru
      _
    // Predicated region
    $region18: #{multimodal_classifier.1} parent=1 // pred_check
      _
    $region19: #{multimodal_classifier.1} parent=1 // pred_check_branch
      %51 = sbr.rel (0) target = $region21
    $region20: #{multimodal_classifier.1} parent=1 // pred_region
      _
    $region21: #{multimodal_classifier.1} parent=1 // pred_fallthru
      _
    // Predicated region
    $region22: #{multimodal_classifier.1} parent=1 // pred_check
      _
    $region23: #{multimodal_classifier.1} parent=1 // pred_check_branch
      %53 = sbr.rel (0) target = $region25
    $region24: #{multimodal_classifier.1} parent=1 // pred_region
      _
    $region25: #{multimodal_classifier.1} parent=1 // pred_fallthru
      _
    // Predicated region
    $region26: #{multimodal_classifier.1} parent=1 // pred_check
      _
    $region27: #{multimodal_classifier.1} parent=1 // pred_check_branch
      %55 = sbr.rel (0) target = $region29
    $region28: #{multimodal_classifier.1} parent=1 // pred_region
      _
    $region29: #{multimodal_classifier.1} parent=1 // pred_fallthru
      _
    // Predicated region
    $region30: #{multimodal_classifier.1} parent=1 // pred_check
      _
    $region31: #{multimodal_classifier.1} parent=1 // pred_check_branch
      %57 = sbr.rel (0) target = $region33
    $region32: #{multimodal_classifier.1} parent=1 // pred_region
      _
    $region33: #{multimodal_classifier.1} parent=1 // pred_fallthru
      _
    // Predicated region
    $region34: #{multimodal_classifier.1} parent=1 // pred_check
      _
    $region35: #{multimodal_classifier.1} parent=1 // pred_check_branch
      %59 = sbr.rel (0) target = $region37
    $region36: #{multimodal_classifier.1} parent=1 // pred_region
      _
    $region37: #{multimodal_classifier.1} parent=1 // pred_fallthru
      _
    // Predicated region
    $region38: #{multimodal_classifier.1} parent=1 // pred_check
      _
    $region39: #{multimodal_classifier.1} parent=1 // pred_check_branch
      %61 = sbr.rel (0) target = $region41
    $region40: #{multimodal_classifier.1} parent=1 // pred_region
      _
    $region41: #{multimodal_classifier.1} parent=1 // pred_fallthru
      _
    // Predicated region
    $region42: #{multimodal_classifier.1} parent=1 // pred_check
      _
    $region43: #{multimodal_classifier.1} parent=1 // pred_check_branch
      %63 = sbr.rel (0) target = $region45
    $region44: #{multimodal_classifier.1} parent=1 // pred_region
      %65 = vsyncadd [#allocation5], 0
      %s66 = sshll.u32 %s10, 4
      %s67 = int_to_ptr.hbm [resolvable:$true] %s66
      %s68 = sshll.u32 [#allocation6], 4
      %s69 = int_to_ptr.vmem [resolvable:$true] %s68
      %74 = dma.hbm_to_vmem [thread:$0]  %s67, 2048, %s69, [#allocation5], 128, 128, 8
    $region45: #{multimodal_classifier.1} parent=1 // pred_fallthru
      _
    // Predicated region
    $region46: #{multimodal_classifier.1} parent=1 // pred_check
      _
    $region47: #{multimodal_classifier.1} parent=1 // pred_check_branch
      %76 = sbr.rel (0) target = $region49
    $region48: #{multimodal_classifier.1} parent=1 // pred_region
      _
    $region49: #{multimodal_classifier.1} parent=1 // pred_fallthru
      _
    // Predicated region
    $region50: #{multimodal_classifier.1} parent=1 // pred_check
      _
    $region51: #{multimodal_classifier.1} parent=1 // pred_check_branch
      %78 = sbr.rel (0) target = $region53
    $region52: #{multimodal_classifier.1} parent=1 // pred_region
      _
    $region53: #{multimodal_classifier.1} parent=1 // pred_fallthru
      _
    // Predicated region
    $region54: #{multimodal_classifier.1} parent=1 // pred_check
      _
    $region55: #{multimodal_classifier.1} parent=1 // pred_check_branch
      %80 = sbr.rel (0) target = $region57
    $region56: #{multimodal_classifier.1} parent=1 // pred_region
      %82 = dma.done [#allocation3], 1024
    $region57: #{multimodal_classifier.1} parent=1 // pred_fallthru
      _
    // Predicated region
    $region58: #{multimodal_classifier.1} parent=1 // pred_check
      _
    $region59: #{multimodal_classifier.1} parent=1 // pred_check_branch
      %84 = sbr.rel (0) target = $region61
    $region60: #{multimodal_classifier.1} parent=1 // pred_region
      %86 = dma.done [#allocation5], 1024
    $region61: #{multimodal_classifier.1} parent=1 // pred_fallthru
      _
    // Predicated region
    $region62: #{multimodal_classifier.1} parent=1 // pred_check
      _
    $region63: #{multimodal_classifier.1} parent=1 // pred_check_branch
      %88 = sbr.rel (0) target = $region65
    $region64: #{multimodal_classifier.1} parent=1 // pred_region
      %90 = dma.done [#allocation5], 2048
    $region65: #{multimodal_classifier.1} parent=1 // pred_fallthru
      _
    %v91 = vld [vmem:[%s0] sm:$0xff]
    %v92 = vld [vmem:[%s1] sm:$0xff]
    %v93 = vld [vmem:[%s1 + $0x8] sm:$0xff]
    %v94 = vld [vmem:[%s1 + $0x10] sm:$0xff]
    %v95 = vld [vmem:[%s1 + $0x18] sm:$0xff]
    %v96 = vld [vmem:[%s1 + $0x20] sm:$0xff]
    %v97 = vld [vmem:[%s1 + $0x28] sm:$0xff]
    %v98 = vld [vmem:[%s1 + $0x30] sm:$0xff]
    %v99 = vld [vmem:[%s1 + $0x38] sm:$0xff]
    %v100 = vld [vmem:[%s12] sm:$0x1]
    %v101 = vperm.slane %v100, 0
    %vm102 = vcmask 523264
    %v104 = vsel %vm102, %v91, 0
    %106 = vmatpush.msra.mxu0 0.0
    %107 = vmatpush.msra.mxu0 0.0
    %108 = vmatpush.msra.mxu0 0.0
    %109 = vmatpush.msra.mxu0 0.0
    %110 = vmatpush.msra.mxu0 0.0
    %111 = vmatpush.msra.mxu0 0.0
    %112 = vmatpush.msra.mxu0 0.0
    %113 = vmatpush.msra.mxu0 0.0
    %114 = vmatpush.msra.mxu0 %v99
    %115 = vmatpush.msra.mxu0 %v98
    %116 = vmatpush.msra.mxu0 %v97
    %117 = vmatpush.msra.mxu0 %v96
    %118 = vmatpush.msra.mxu0 %v95
    %119 = vmatpush.msra.mxu0 %v94
    %120 = vmatpush.msra.mxu0 %v93
    %121 = vmatpush.msra.mxu0 %v92
    %122 = vmatmul.f32.gmra.mxu0 %v104
    %v123 = vpop.f32.mrf.mxu0
    %v124 = vadd.f32 %v101, %v123
    %125 = vdwg.mxu0
    %v126 = vld [vmem:[#allocation2] sm:$0xff]
    %v127 = vld [vmem:[#allocation2 + $0x8] sm:$0xff]
    %v128 = vld [vmem:[#allocation2 + $0x10] sm:$0xff]
    %v129 = vld [vmem:[#allocation2 + $0x18] sm:$0xff]
    %v130 = vld [vmem:[#allocation2 + $0x20] sm:$0xff]
    %v131 = vld [vmem:[#allocation2 + $0x28] sm:$0xff]
    %v132 = vld [vmem:[#allocation2 + $0x30] sm:$0xff]
    %v133 = vld [vmem:[#allocation2 + $0x38] sm:$0xff]
    %v135 = vsel %vm102, %v124, 0
    %137 = vmatpush.msra.mxu0 0.0
    %138 = vmatpush.msra.mxu0 0.0
    %139 = vmatpush.msra.mxu0 0.0
    %140 = vmatpush.msra.mxu0 0.0
    %141 = vmatpush.msra.mxu0 0.0
    %142 = vmatpush.msra.mxu0 0.0
    %143 = vmatpush.msra.mxu0 0.0
    %144 = vmatpush.msra.mxu0 0.0
    %145 = vmatpush.msra.mxu0 %v133
    %146 = vmatpush.msra.mxu0 %v132
    %147 = vmatpush.msra.mxu0 %v131
    %148 = vmatpush.msra.mxu0 %v130
    %149 = vmatpush.msra.mxu0 %v129
    %150 = vmatpush.msra.mxu0 %v128
    %151 = vmatpush.msra.mxu0 %v127
    %152 = vmatpush.msra.mxu0 %v126
    %153 = vmatmul.f32.gmra.mxu0 %v135
    %v154 = vpop.f32.mrf.mxu0
    %v155 = vadd.f32 0.0, %v154
    %156 = vdwg.mxu0
    %v157 = vsub.f32 %v124, %v155
    %v158 = vmul.f32 %v157, %v157
    %v160 = vsel %vm102, %v158, 0
    %162 = vmatpush.msra.mxu0 0.0
    %163 = vmatpush.msra.mxu0 0.0
    %164 = vmatpush.msra.mxu0 0.0
    %165 = vmatpush.msra.mxu0 0.0
    %166 = vmatpush.msra.mxu0 0.0
    %167 = vmatpush.msra.mxu0 0.0
    %168 = vmatpush.msra.mxu0 0.0
    %169 = vmatpush.msra.mxu0 0.0
    %170 = vmatpush.msra.mxu0 %v133
    %171 = vmatpush.msra.mxu0 %v132
    %172 = vmatpush.msra.mxu0 %v131
    %173 = vmatpush.msra.mxu0 %v130
    %174 = vmatpush.msra.mxu0 %v129
    %175 = vmatpush.msra.mxu0 %v128
    %176 = vmatpush.msra.mxu0 %v127
    %177 = vmatpush.msra.mxu0 %v126
    %178 = vmatmul.f32.gmra.mxu0 %v160
    %v179 = vpop.f32.mrf.mxu0
    %v180 = vadd.f32 1e-05, %v179
    %181 = vdwg.mxu0
    %v182 = vrsqrt.pop %v180
    %v183 = vmul.f32 %v182, %v180
    %v184 = vmul.f32 %v183, %v182
    %v185 = vmul.f32 0.5, %v184
    %v186 = vsub.f32 1.5, %v185
    %v187 = vmul.f32 %v182, %v186
    %vm188 = vweird.f32 %v180
    %vm189 = vweird.f32 %v182
    %vm190 = vmor %vm188, %vm189
    %v191 = vsel %vm190, %v182, %v187
    %v192 = vmul.f32 %v157, %v191
    %v193 = vld [vmem:[%s12 + $0x1] sm:$0x1]
    %v194 = vperm.slane %v193, 0
    %v195 = vmul.f32 %v192, %v194
    %v196 = vld [vmem:[%s12 + $0x2] sm:$0x1]
    %v197 = vperm.slane %v196, 0
    %v198 = vadd.f32 %v195, %v197
    %v199 = vmax.f32 %v198, 0.0
    %v200 = vld [vmem:[#allocation4] sm:$0xff]
    %v201 = vld [vmem:[#allocation4 + $0x8] sm:$0xff]
    %v202 = vld [vmem:[#allocation4 + $0x10] sm:$0xff]
    %v203 = vld [vmem:[#allocation4 + $0x18] sm:$0xff]
    %v204 = vld [vmem:[#allocation4 + $0x20] sm:$0xff]
    %v205 = vld [vmem:[#allocation4 + $0x28] sm:$0xff]
    %v206 = vld [vmem:[#allocation4 + $0x30] sm:$0xff]
    %v207 = vld [vmem:[#allocation4 + $0x38] sm:$0xff]
    %v208 = vld [vmem:[%s12 + $0x3] sm:$0x1]
    %v209 = vperm.slane %v208, 0
    %v211 = vsel %vm102, %v199, 0
    %213 = vmatpush.msra.mxu0 0.0
    %214 = vmatpush.msra.mxu0 0.0
    %215 = vmatpush.msra.mxu0 0.0
    %216 = vmatpush.msra.mxu0 0.0
    %217 = vmatpush.msra.mxu0 0.0
    %218 = vmatpush.msra.mxu0 0.0
    %219 = vmatpush.msra.mxu0 0.0
    %220 = vmatpush.msra.mxu0 0.0
    %221 = vmatpush.msra.mxu0 %v207
    %222 = vmatpush.msra.mxu0 %v206
    %223 = vmatpush.msra.mxu0 %v205
    %224 = vmatpush.msra.mxu0 %v204
    %225 = vmatpush.msra.mxu0 %v203
    %226 = vmatpush.msra.mxu0 %v202
    %227 = vmatpush.msra.mxu0 %v201
    %228 = vmatpush.msra.mxu0 %v200
    %229 = vmatmul.f32.gmra.mxu0 %v211
    %v230 = vpop.f32.mrf.mxu0
    %v231 = vadd.f32 %v209, %v230
    %232 = vdwg.mxu0
    %v233 = vld [vmem:[%s4] sm:$0xff]
    %v234 = vld [vmem:[%s4 + $0x8] sm:$0xff]
    %v235 = vld [vmem:[%s4 + $0x10] sm:$0xff]
    %v236 = vld [vmem:[%s4 + $0x18] sm:$0xff]
    %v237 = vld [vmem:[%s4 + $0x20] sm:$0xff]
    %v238 = vld [vmem:[%s4 + $0x28] sm:$0xff]
    %v239 = vld [vmem:[%s4 + $0x30] sm:$0xff]
    %v240 = vld [vmem:[%s4 + $0x38] sm:$0xff]
    %v241 = vld [vmem:[%s12 + $0x4] sm:$0x1]
    %v242 = vperm.slane %v241, 0
    %243 = vmatpush.msra.mxu0 0.0
    %244 = vmatpush.msra.mxu0 0.0
    %245 = vmatpush.msra.mxu0 0.0
    %246 = vmatpush.msra.mxu0 0.0
    %247 = vmatpush.msra.mxu0 0.0
    %248 = vmatpush.msra.mxu0 0.0
    %249 = vmatpush.msra.mxu0 0.0
    %250 = vmatpush.msra.mxu0 0.0
    %251 = vmatpush.msra.mxu0 %v240
    %252 = vmatpush.msra.mxu0 %v239
    %253 = vmatpush.msra.mxu0 %v238
    %254 = vmatpush.msra.mxu0 %v237
    %255 = vmatpush.msra.mxu0 %v236
    %256 = vmatpush.msra.mxu0 %v235
    %257 = vmatpush.msra.mxu0 %v234
    %258 = vmatpush.msra.mxu0 %v233
    %259 = vmatmul.f32.gmra.mxu0 %v211
    %v260 = vpop.f32.mrf.mxu0
    %v261 = vadd.f32 %v242, %v260
    %262 = vdwg.mxu0
    %vm263 = vcmask 261120
    %v264 = vsel %vm263, %v261, 0.0
    %265 = vadd.xlane.f32.xlu0 %v264
    %v266 = vpop.xlane.xlu0 %265
    %v267 = vrcp.pop 32.0
    %v268 = vmul.f32 32.0, %v267
    %v269 = vsub.f32 1.0, %v268
    %v270 = vmul.f32 %v267, %v269
    %v271 = vadd.f32 %v267, %v270
    %vm272 = vweird.f32 %v267
    %v273 = vsel %vm272, %v267, %v271
    %v274 = vmul.f32 %v266, %v273
    %v275 = vsub.f32 %v261, %v274
    %v276 = vmul.f32 %v275, %v275
    %v277 = vsel %vm263, %v276, 0.0
    %278 = vadd.xlane.f32.xlu0 %v277
    %v279 = vpop.xlane.xlu0 %278
    %v280 = vmul.f32 %v279, %v273
    %v281 = vadd.f32 %v280, 1e-05
    %v282 = vrsqrt.pop %v281
    %v283 = vmul.f32 %v282, %v281
    %v284 = vmul.f32 %v283, %v282
    %v285 = vmul.f32 0.5, %v284
    %v286 = vsub.f32 1.5, %v285
    %v287 = vmul.f32 %v282, %v286
    %vm288 = vweird.f32 %v281
    %vm289 = vweird.f32 %v282
    %vm290 = vmor %vm288, %vm289
    %v291 = vsel %vm290, %v282, %v287
    %v292 = vmul.f32 %v275, %v291
    %v293 = vld [vmem:[%s12 + $0x5] sm:$0x1]
    %v294 = vperm.slane %v293, 0
    %v295 = vmul.f32 %v292, %v294
    %v296 = vld [vmem:[%s12 + $0x6] sm:$0x1]
    %v297 = vperm.slane %v296, 0
    %v298 = vadd.f32 %v295, %v297
    %v299 = vmax.f32 %v298, 0.0
    %v300 = vld [vmem:[%s5] sm:$0xff]
    %v301 = vld [vmem:[%s5 + $0x8] sm:$0xff]
    %v302 = vld [vmem:[%s5 + $0x10] sm:$0xff]
    %v303 = vld [vmem:[%s5 + $0x18] sm:$0xff]
    %v304 = vld [vmem:[%s12 + $0x7] sm:$0x1]
    %v305 = vperm.slane %v304, 0
    %v307 = vsel %vm263, %v299, 0
    %309 = vmatpush.msra.mxu0 0.0
    %310 = vmatpush.msra.mxu0 0.0
    %311 = vmatpush.msra.mxu0 0.0
    %312 = vmatpush.msra.mxu0 0.0
    %313 = vmatpush.msra.mxu0 0.0
    %314 = vmatpush.msra.mxu0 0.0
    %315 = vmatpush.msra.mxu0 0.0
    %316 = vmatpush.msra.mxu0 0.0
    %317 = vmatpush.msra.mxu0 0.0
    %318 = vmatpush.msra.mxu0 0.0
    %319 = vmatpush.msra.mxu0 0.0
    %320 = vmatpush.msra.mxu0 0.0
    %321 = vmatpush.msra.mxu0 %v303
    %322 = vmatpush.msra.mxu0 %v302
    %323 = vmatpush.msra.mxu0 %v301
    %324 = vmatpush.msra.mxu0 %v300
    %325 = vmatmul.f32.gmra.mxu0 %v307
    %v326 = vpop.f32.mrf.mxu0
    %v327 = vadd.f32 %v305, %v326
    %328 = vdwg.mxu0
    %vm329 = vcmask 31744
    %v330 = vsel %vm329, %v327, -inf
    %331 = vmax.xlane.f32.xlu0 %v330
    %v332 = vpop.xlane.xlu0 %331
    %v333 = vsub.f32 %v327, %v332
    %v334 = vmul.f32 %v333, 1.442695
    %v335 = vpow.pop %v334
    %v336 = vsel %vm329, %v335, 0.0
    %337 = vadd.xlane.f32.xlu0 %v336
    %v338 = vpop.xlane.xlu0 %337
    %v339 = vrcp.pop %v338
    %v340 = vmul.f32 %v338, %v339
    %v341 = vsub.f32 1.0, %v340
    %v342 = vmul.f32 %v339, %v341
    %v343 = vadd.f32 %v339, %v342
    %vm344 = vweird.f32 %v338
    %vm345 = vweird.f32 %v339
    %vm346 = vmor %vm344, %vm345
    %v347 = vsel %vm346, %v339, %v343
    %v348 = vand.u32 2147483647, %v338
    %vm349 = vcmp.eq.f32.partialorder %v348, 8.507059e+37
    %v350 = vand.u32 %v338, 2147483648
    %v351 = vor.u32 1.1754944e-38, %v350
    %v352 = vsel %vm349, %v351, %v347
    %v353 = vmul.f32 %v335, %v352
    %v354 = vld [vmem:[%s6] sm:$0xf]
    %v356 = vsel %vm329, %v353, 0
    %vm358 = vcmask 1043456
    %v360 = vsel %vm358, %v354, 0
    %362 = vmatpush.msra.mxu0 0.0
    %363 = vmatpush.msra.mxu0 0.0
    %364 = vmatpush.msra.mxu0 0.0
    %365 = vmatpush.msra.mxu0 0.0
    %366 = vmatpush.msra.mxu0 0.0
    %367 = vmatpush.msra.mxu0 0.0
    %368 = vmatpush.msra.mxu0 0.0
    %369 = vmatpush.msra.mxu0 0.0
    %370 = vmatpush.msra.mxu0 0.0
    %371 = vmatpush.msra.mxu0 0.0
    %372 = vmatpush.msra.mxu0 0.0
    %373 = vmatpush.msra.mxu0 0.0
    %374 = vmatpush.msra.mxu0 0.0
    %375 = vmatpush.msra.mxu0 0.0
    %376 = vmatpush.msra.mxu0 0.0
    %377 = vmatpush.msra.mxu0 %v360
    %378 = vmatmul.f32.gmra.mxu0 %v356
    %v379 = vpop.f32.mrf.mxu0
    %v380 = vadd.f32 0.0, %v379
    %381 = vdwg.mxu0
    %v382 = vmul.f32 %v231, %v380
    %v383 = vld [vmem:[%s7] sm:$0xff]
    %v384 = vld [vmem:[%s7 + $0x8] sm:$0xff]
    %v385 = vld [vmem:[%s7 + $0x10] sm:$0xff]
    %v386 = vld [vmem:[%s7 + $0x18] sm:$0xff]
    %v387 = vld [vmem:[%s7 + $0x20] sm:$0xff]
    %v388 = vld [vmem:[%s7 + $0x28] sm:$0xff]
    %v389 = vld [vmem:[%s7 + $0x30] sm:$0xff]
    %v390 = vld [vmem:[%s7 + $0x38] sm:$0xff]
    %v391 = vld [vmem:[%s7 + $0x40] sm:$0xff]
    %v392 = vld [vmem:[%s7 + $0x48] sm:$0xff]
    %v393 = vld [vmem:[%s7 + $0x50] sm:$0xff]
    %v394 = vld [vmem:[%s7 + $0x58] sm:$0xff]
    %v395 = vld [vmem:[%s7 + $0x60] sm:$0xff]
    %v396 = vld [vmem:[%s7 + $0x68] sm:$0xff]
    %v397 = vld [vmem:[%s7 + $0x70] sm:$0xff]
    %v398 = vld [vmem:[%s7 + $0x78] sm:$0xff]
    %v399 = vld [vmem:[%s12 + $0x8] sm:$0x1]
    %v400 = vperm.slane %v399, 0
    %401 = vmatpush.msra.mxu0 %v398
    %402 = vmatpush.msra.mxu0 %v397
    %403 = vmatpush.msra.mxu0 %v396
    %404 = vmatpush.msra.mxu0 %v395
    %405 = vmatpush.msra.mxu0 %v394
    %406 = vmatpush.msra.mxu0 %v393
    %407 = vmatpush.msra.mxu0 %v392
    %408 = vmatpush.msra.mxu0 %v391
    %409 = vmatpush.msra.mxu0 %v390
    %410 = vmatpush.msra.mxu0 %v389
    %411 = vmatpush.msra.mxu0 %v388
    %412 = vmatpush.msra.mxu0 %v387
    %413 = vmatpush.msra.mxu0 %v386
    %414 = vmatpush.msra.mxu0 %v385
    %415 = vmatpush.msra.mxu0 %v384
    %416 = vmatpush.msra.mxu0 %v383
    %417 = vmatmul.f32.gmra.mxu0 %v382
    %v418 = vpop.f32.mrf.mxu0
    %v419 = vadd.f32 %v400, %v418
    %420 = vdwg.mxu0
    %421 = vadd.xlane.f32.xlu0 %v419
    %v422 = vpop.xlane.xlu0 %421
    %v423 = vrcp.pop 128.0
    %v424 = vmul.f32 128.0, %v423
    %v425 = vsub.f32 1.0, %v424
    %v426 = vmul.f32 %v423, %v425
    %v427 = vadd.f32 %v423, %v426
    %vm428 = vweird.f32 %v423
    %v429 = vsel %vm428, %v423, %v427
    %v430 = vmul.f32 %v422, %v429
    %v431 = vsub.f32 %v419, %v430
    %v432 = vmul.f32 %v431, %v431
    %433 = vadd.xlane.f32.xlu0 %v432
    %v434 = vpop.xlane.xlu0 %433
    %v435 = vmul.f32 %v434, %v429
    %v436 = vadd.f32 %v435, 1e-05
    %v437 = vrsqrt.pop %v436
    %v438 = vmul.f32 %v437, %v436
    %v439 = vmul.f32 %v438, %v437
    %v440 = vmul.f32 0.5, %v439
    %v441 = vsub.f32 1.5, %v440
    %v442 = vmul.f32 %v437, %v441
    %vm443 = vweird.f32 %v436
    %vm444 = vweird.f32 %v437
    %vm445 = vmor %vm443, %vm444
    %v446 = vsel %vm445, %v437, %v442
    %v447 = vmul.f32 %v431, %v446
    %v448 = vld [vmem:[%s12 + $0x9] sm:$0x1]
    %v449 = vperm.slane %v448, 0
    %v450 = vmul.f32 %v447, %v449
    %v451 = vld [vmem:[%s12 + $0xa] sm:$0x1]
    %v452 = vperm.slane %v451, 0
    %v453 = vadd.f32 %v450, %v452
    %v454 = vmax.f32 %v453, 0.0
    %v455 = vld [vmem:[%s8] sm:$0xff]
    %v456 = vld [vmem:[%s8 + $0x8] sm:$0xff]
    %v457 = vld [vmem:[%s8 + $0x10] sm:$0xff]
    %v458 = vld [vmem:[%s8 + $0x18] sm:$0xff]
    %v459 = vld [vmem:[%s8 + $0x20] sm:$0xff]
    %v460 = vld [vmem:[%s8 + $0x28] sm:$0xff]
    %v461 = vld [vmem:[%s8 + $0x30] sm:$0xff]
    %v462 = vld [vmem:[%s8 + $0x38] sm:$0xff]
    %v463 = vld [vmem:[%s8 + $0x40] sm:$0xff]
    %v464 = vld [vmem:[%s8 + $0x48] sm:$0xff]
    %v465 = vld [vmem:[%s8 + $0x50] sm:$0xff]
    %v466 = vld [vmem:[%s8 + $0x58] sm:$0xff]
    %v467 = vld [vmem:[%s8 + $0x60] sm:$0xff]
    %v468 = vld [vmem:[%s8 + $0x68] sm:$0xff]
    %v469 = vld [vmem:[%s8 + $0x70] sm:$0xff]
    %v470 = vld [vmem:[%s8 + $0x78] sm:$0xff]
    %v471 = vld [vmem:[%s12 + $0xb] sm:$0x1]
    %v472 = vperm.slane %v471, 0
    %473 = vmatpush.msra.mxu0 %v470
    %474 = vmatpush.msra.mxu0 %v469
    %475 = vmatpush.msra.mxu0 %v468
    %476 = vmatpush.msra.mxu0 %v467
    %477 = vmatpush.msra.mxu0 %v466
    %478 = vmatpush.msra.mxu0 %v465
    %479 = vmatpush.msra.mxu0 %v464
    %480 = vmatpush.msra.mxu0 %v463
    %481 = vmatpush.msra.mxu0 %v462
    %482 = vmatpush.msra.mxu0 %v461
    %483 = vmatpush.msra.mxu0 %v460
    %484 = vmatpush.msra.mxu0 %v459
    %485 = vmatpush.msra.mxu0 %v458
    %486 = vmatpush.msra.mxu0 %v457
    %487 = vmatpush.msra.mxu0 %v456
    %488 = vmatpush.msra.mxu0 %v455
    %489 = vmatmul.f32.gmra.mxu0 %v454
    %v490 = vpop.f32.mrf.mxu0
    %v491 = vadd.f32 %v472, %v490
    %492 = vdwg.mxu0
    %v493 = vxor.u32 %v491, 2147483648
    %v494 = vmul.f32 %v493, 1.442695
    %v495 = vpow.pop %v494
    %v496 = vadd.f32 %v495, 1.0
    %v497 = vrcp.pop %v496
    %v498 = vmul.f32 %v496, %v497
    %v499 = vsub.f32 1.0, %v498
    %v500 = vmul.f32 %v497, %v499
    %v501 = vadd.f32 %v497, %v500
    %vm502 = vweird.f32 %v496
    %vm503 = vweird.f32 %v497
    %vm504 = vmor %vm502, %vm503
    %v505 = vsel %vm504, %v497, %v501
    %v506 = vand.u32 2147483647, %v496
    %vm507 = vcmp.eq.f32.partialorder %v506, 8.507059e+37
    %v508 = vand.u32 %v496, 2147483648
    %v509 = vor.u32 1.1754944e-38, %v508
    %v510 = vsel %vm507, %v509, %v505
    %v511 = vmul.f32 1.0, %v510
    %513 = vset.pattern.permute.xlu0 0
    %514 = vperm.xlu0 %513, %v511
    %v515 = vpop.permute.xlu0 %514
    %v517 = vmul.f32 %v382, %v515
    %v518 = vld [vmem:[%s9] sm:$0xff]
    %v519 = vld [vmem:[%s9 + $0x8] sm:$0xff]
    %v520 = vld [vmem:[%s9 + $0x10] sm:$0xff]
    %v521 = vld [vmem:[%s9 + $0x18] sm:$0xff]
    %v522 = vld [vmem:[%s9 + $0x20] sm:$0xff]
    %v523 = vld [vmem:[%s9 + $0x28] sm:$0xff]
    %v524 = vld [vmem:[%s9 + $0x30] sm:$0xff]
    %v525 = vld [vmem:[%s9 + $0x38] sm:$0xff]
    %v526 = vld [vmem:[%s9 + $0x40] sm:$0xff]
    %v527 = vld [vmem:[%s9 + $0x48] sm:$0xff]
    %v528 = vld [vmem:[%s9 + $0x50] sm:$0xff]
    %v529 = vld [vmem:[%s9 + $0x58] sm:$0xff]
    %v530 = vld [vmem:[%s9 + $0x60] sm:$0xff]
    %v531 = vld [vmem:[%s9 + $0x68] sm:$0xff]
    %v532 = vld [vmem:[%s9 + $0x70] sm:$0xff]
    %v533 = vld [vmem:[%s9 + $0x78] sm:$0xff]
    %v534 = vld [vmem:[%s12 + $0xc] sm:$0x1]
    %v535 = vperm.slane %v534, 0
    %536 = vmatpush.msra.mxu0 %v533
    %537 = vmatpush.msra.mxu0 %v532
    %538 = vmatpush.msra.mxu0 %v531
    %539 = vmatpush.msra.mxu0 %v530
    %540 = vmatpush.msra.mxu0 %v529
    %541 = vmatpush.msra.mxu0 %v528
    %542 = vmatpush.msra.mxu0 %v527
    %543 = vmatpush.msra.mxu0 %v526
    %544 = vmatpush.msra.mxu0 %v525
    %545 = vmatpush.msra.mxu0 %v524
    %546 = vmatpush.msra.mxu0 %v523
    %547 = vmatpush.msra.mxu0 %v522
    %548 = vmatpush.msra.mxu0 %v521
    %549 = vmatpush.msra.mxu0 %v520
    %550 = vmatpush.msra.mxu0 %v519
    %551 = vmatpush.msra.mxu0 %v518
    %552 = vmatmul.f32.gmra.mxu0 %v517
    %v553 = vpop.f32.mrf.mxu0
    %v554 = vadd.f32 %v535, %v553
    %555 = vdwg.mxu0
    %v556 = vld [vmem:[#allocation6] sm:$0xff]
    %v557 = vld [vmem:[#allocation6 + $0x8] sm:$0xff]
    %v558 = vld [vmem:[#allocation6 + $0x10] sm:$0xff]
    %v559 = vld [vmem:[#allocation6 + $0x18] sm:$0xff]
    %v560 = vld [vmem:[#allocation6 + $0x20] sm:$0xff]
    %v561 = vld [vmem:[#allocation6 + $0x28] sm:$0xff]
    %v562 = vld [vmem:[#allocation6 + $0x30] sm:$0xff]
    %v563 = vld [vmem:[#allocation6 + $0x38] sm:$0xff]
    %v564 = vld [vmem:[#allocation6 + $0x40] sm:$0xff]
    %v565 = vld [vmem:[#allocation6 + $0x48] sm:$0xff]
    %v566 = vld [vmem:[#allocation6 + $0x50] sm:$0xff]
    %v567 = vld [vmem:[#allocation6 + $0x58] sm:$0xff]
    %v568 = vld [vmem:[#allocation6 + $0x60] sm:$0xff]
    %v569 = vld [vmem:[#allocation6 + $0x68] sm:$0xff]
    %v570 = vld [vmem:[#allocation6 + $0x70] sm:$0xff]
    %v571 = vld [vmem:[#allocation6 + $0x78] sm:$0xff]
    %572 = vmatpush.msra.mxu0 %v571
    %573 = vmatpush.msra.mxu0 %v570
    %574 = vmatpush.msra.mxu0 %v569
    %575 = vmatpush.msra.mxu0 %v568
    %576 = vmatpush.msra.mxu0 %v567
    %577 = vmatpush.msra.mxu0 %v566
    %578 = vmatpush.msra.mxu0 %v565
    %579 = vmatpush.msra.mxu0 %v564
    %580 = vmatpush.msra.mxu0 %v563
    %581 = vmatpush.msra.mxu0 %v562
    %582 = vmatpush.msra.mxu0 %v561
    %583 = vmatpush.msra.mxu0 %v560
    %584 = vmatpush.msra.mxu0 %v559
    %585 = vmatpush.msra.mxu0 %v558
    %586 = vmatpush.msra.mxu0 %v557
    %587 = vmatpush.msra.mxu0 %v556
    %588 = vmatmul.f32.gmra.mxu0 %v554
    %v589 = vpop.f32.mrf.mxu0
    %v590 = vadd.f32 0.0, %v589
    %591 = vdwg.mxu0
    %v592 = vsub.f32 %v554, %v590
    %v593 = vmul.f32 %v592, %v592
    %594 = vmatpush.msra.mxu0 %v571
    %595 = vmatpush.msra.mxu0 %v570
    %596 = vmatpush.msra.mxu0 %v569
    %597 = vmatpush.msra.mxu0 %v568
    %598 = vmatpush.msra.mxu0 %v567
    %599 = vmatpush.msra.mxu0 %v566
    %600 = vmatpush.msra.mxu0 %v565
    %601 = vmatpush.msra.mxu0 %v564
    %602 = vmatpush.msra.mxu0 %v563
    %603 = vmatpush.msra.mxu0 %v562
    %604 = vmatpush.msra.mxu0 %v561
    %605 = vmatpush.msra.mxu0 %v560
    %606 = vmatpush.msra.mxu0 %v559
    %607 = vmatpush.msra.mxu0 %v558
    %608 = vmatpush.msra.mxu0 %v557
    %609 = vmatpush.msra.mxu0 %v556
    %610 = vmatmul.f32.gmra.mxu0 %v593
    %v611 = vpop.f32.mrf.mxu0
    %v612 = vadd.f32 1e-05, %v611
    %613 = vdwg.mxu0
    %v614 = vrsqrt.pop %v612
    %v615 = vmul.f32 %v614, %v612
    %v616 = vmul.f32 %v615, %v614
    %v617 = vmul.f32 0.5, %v616
    %v618 = vsub.f32 1.5, %v617
    %v619 = vmul.f32 %v614, %v618
    %vm620 = vweird.f32 %v612
    %vm621 = vweird.f32 %v614
    %vm622 = vmor %vm620, %vm621
    %v623 = vsel %vm622, %v614, %v619
    %v624 = vmul.f32 %v592, %v623
    %v625 = vld [vmem:[%s12 + $0xd] sm:$0x1]
    %v626 = vperm.slane %v625, 0
    %v627 = vmul.f32 %v624, %v626
    %v628 = vld [vmem:[%s12 + $0xe] sm:$0x1]
    %v629 = vperm.slane %v628, 0
    %v630 = vadd.f32 %v627, %v629
    %v631 = vmax.f32 %v630, 0.0
    %v632 = vld [vmem:[%s11] sm:$0xff]
    %v633 = vld [vmem:[%s11 + $0x8] sm:$0xff]
    %v634 = vld [vmem:[%s11 + $0x10] sm:$0xff]
    %v635 = vld [vmem:[%s11 + $0x18] sm:$0xff]
    %v636 = vld [vmem:[%s11 + $0x20] sm:$0xff]
    %v637 = vld [vmem:[%s11 + $0x28] sm:$0xff]
    %v638 = vld [vmem:[%s11 + $0x30] sm:$0xff]
    %v639 = vld [vmem:[%s11 + $0x38] sm:$0xff]
    %v640 = vld [vmem:[%s11 + $0x40] sm:$0xff]
    %v641 = vld [vmem:[%s11 + $0x48] sm:$0xff]
    %v642 = vld [vmem:[%s11 + $0x50] sm:$0xff]
    %v643 = vld [vmem:[%s11 + $0x58] sm:$0xff]
    %v644 = vld [vmem:[%s11 + $0x60] sm:$0xff]
    %v645 = vld [vmem:[%s11 + $0x68] sm:$0xff]
    %v646 = vld [vmem:[%s11 + $0x70] sm:$0xff]
    %v647 = vld [vmem:[%s11 + $0x78] sm:$0xff]
    %v648 = vld [vmem:[%s12 + $0xf] sm:$0x1]
    %v649 = vperm.slane %v648, 0
    %650 = vmatpush.msra.mxu0 %v647
    %651 = vmatpush.msra.mxu0 %v646
    %652 = vmatpush.msra.mxu0 %v645
    %653 = vmatpush.msra.mxu0 %v644
    %654 = vmatpush.msra.mxu0 %v643
    %655 = vmatpush.msra.mxu0 %v642
    %656 = vmatpush.msra.mxu0 %v641
    %657 = vmatpush.msra.mxu0 %v640
    %658 = vmatpush.msra.mxu0 %v639
    %659 = vmatpush.msra.mxu0 %v638
    %660 = vmatpush.msra.mxu0 %v637
    %661 = vmatpush.msra.mxu0 %v636
    %662 = vmatpush.msra.mxu0 %v635
    %663 = vmatpush.msra.mxu0 %v634
    %664 = vmatpush.msra.mxu0 %v633
    %665 = vmatpush.msra.mxu0 %v632
    %666 = vmatmul.f32.gmra.mxu0 %v631
    %v667 = vpop.f32.mrf.mxu0
    %v668 = vadd.f32 %v649, %v667
    %669 = vdwg.mxu0
    %v670 = vxor.u32 %v668, 2147483648
    %v671 = vmul.f32 %v670, 1.442695
    %v672 = vpow.pop %v671
    %v673 = vadd.f32 %v672, 1.0
    %v674 = vrcp.pop %v673
    %v675 = vmul.f32 %v673, %v674
    %v676 = vsub.f32 1.0, %v675
    %v677 = vmul.f32 %v674, %v676
    %v678 = vadd.f32 %v674, %v677
    %vm679 = vweird.f32 %v673
    %vm680 = vweird.f32 %v674
    %vm681 = vmor %vm679, %vm680
    %v682 = vsel %vm681, %v674, %v678
    %v683 = vand.u32 2147483647, %v673
    %vm684 = vcmp.eq.f32.partialorder %v683, 8.507059e+37
    %v685 = vand.u32 %v673, 2147483648
    %v686 = vor.u32 1.1754944e-38, %v685
    %v687 = vsel %vm684, %v686, %v682
    %v688 = vmul.f32 1.0, %v687
    %vm689 = vcmask 23560
    %v690 = vsel %vm689, %v668, -inf
    %691 = vmax.xlane.f32.xlu0 %v690
    %v692 = vpop.xlane.xlu0 %691
    %v693 = vsub.f32 %v668, %v692
    %v694 = vmul.f32 %v693, 1.442695
    %v695 = vpow.pop %v694
    %697 = vrot.lane.b32.xlu0 %v695, 127
    %v698 = vpop.permute.xlu0 %697
    %vm700 = vcmask 15360
    %v701 = vsel %vm700, %v698, 0.0
    %702 = vadd.xlane.f32.xlu0 %v701
    %v703 = vpop.xlane.xlu0 %702
    %v704 = vrcp.pop %v703
    %v705 = vmul.f32 %v703, %v704
    %v706 = vsub.f32 1.0, %v705
    %v707 = vmul.f32 %v704, %v706
    %v708 = vadd.f32 %v704, %v707
    %vm709 = vweird.f32 %v703
    %vm710 = vweird.f32 %v704
    %vm711 = vmor %vm709, %vm710
    %v712 = vsel %vm711, %v704, %v708
    %v713 = vand.u32 2147483647, %v703
    %vm714 = vcmp.eq.f32.partialorder %v713, 8.507059e+37
    %v715 = vand.u32 %v703, 2147483648
    %v716 = vor.u32 1.1754944e-38, %v715
    %v717 = vsel %vm714, %v716, %v712
    %v718 = vmul.f32 %v695, %v717
    %v719 = vsub.f32 1.0, %v688
    %721 = vrot.lane.b32.xlu0 %v719, 1
    %v722 = vpop.permute.xlu0 %721
    %v724 = vmul.f32 %v718, %v722
    %v725 = vadd.f32 %v724, 1e-06
    %v726 = vlog2.pop %v725
    %v727 = vmul.f32 %v726, 0.6931472
    %v728 = vadd.f32 %v688, 1e-06
    %v729 = vlog2.pop %v728
    %v730 = vmul.f32 %v729, 0.6931472
    %731 = vrot.lane.b32.xlu0 %v719, 2
    %v732 = vpop.permute.xlu0 %731
    %v734 = vmul.f32 %v718, %v732
    %v735 = vadd.f32 %v734, 1e-06
    %v736 = vlog2.pop %v735
    %v737 = vmul.f32 %v736, 0.6931472
    %v738 = vlaneseq
    %v739 = vand.u32 %v738, 127
    %vm740 = vcmp.eq.s32.totalorder %v739, 0
    %vm741 = vcmp.eq.s32.totalorder %v739, 1
    %vm742 = vcmp.eq.s32.totalorder %v739, 2
    %744 = vset.pattern.permute.xlu0 2
    %745 = vperm.xlu0 %744, %v737
    %v746 = vpop.permute.xlu0 %745
    %v748 = vsel %vm742, %v746, 0.0
    %750 = vset.pattern.permute.xlu0 0
    %751 = vperm.xlu0 %750, %v730
    %v752 = vpop.permute.xlu0 %751
    %v754 = vsel %vm741, %v752, %v748
    %756 = vset.pattern.permute.xlu0 1
    %757 = vperm.xlu0 %756, %v727
    %v758 = vpop.permute.xlu0 %757
    %v760 = vsel %vm740, %v758, %v754
    %761 = vst [vmem:[%s13] sm:$0xff] %v760
    // Predicated region
    $region66: #{multimodal_classifier.1} parent=1 // pred_check
      _
    $region67: #{multimodal_classifier.1} parent=1 // pred_check_branch
      %763 = sbr.rel (0) target = $region69
    $region68: #{multimodal_classifier.1} parent=1 // pred_region
      _
    $region69: #{multimodal_classifier.1} parent=1 // pred_fallthru
      _
    // Predicated region
    $region70: #{multimodal_classifier.1} parent=1 // pred_check
      _
    $region71: #{multimodal_classifier.1} parent=1 // pred_check_branch
      %765 = sbr.rel (0) target = $region73
    $region72: #{multimodal_classifier.1} parent=1 // pred_region
      _
    $region73: #{multimodal_classifier.1} parent=1 // pred_fallthru
      _
    %766 = vsyncpa [#allocation3], 1
    %767 = vsyncpa [#allocation5], 1

</llo_original>
